<compile_context>
chip_gen: v7x
topology: tpu7x:2x2x1
jax: 0.10.0
libtpu: 0.0.40
codegen_flags: <defaults>
</compile_context>

<pallas_src>
import jax
import jax.numpy as jnp
from jax.experimental import pallas as pl
from jax.experimental.pallas import tpu as pltpu


# Minimum second-to-last block-dim multiple per element size (f32 / bf16 / int8).
_MIN_SUBLANES = {1: 32, 2: 16, 4: 8, 8: 8}


def _normalize_kernel(x_ref, params_ref, o_ref):
    # x_ref: (R, T) in input dtype; params_ref: (R, 2) f32 = [scale, bias].
    p = params_ref[...]
    scale = p[:, 0:1]
    bias = p[:, 1:2]
    x = x_ref[...].astype(jnp.float32)
    o_ref[...] = (x * scale + bias).astype(o_ref.dtype)


def _tpu_vmem_capacity_bytes():
    try:
        info = pltpu.get_tpu_info()
        cap = getattr(info, "vmem_capacity_bytes", None)
        if cap:
            return int(cap)
    except Exception:
        pass
    return 128 * 1024 * 1024  # v5e/v6e default; safe fallback


def _choose_tiles(nc, hw, itemsize, target_bytes):
    """Pick (rows, tile_hw) so the block is ~target_bytes and layout-legal."""
    sub = _MIN_SUBLANES.get(itemsize, 8)
    row_bytes = hw * itemsize

    if row_bytes >= target_bytes and hw > 128:
        # One full-width row already meets the target: also tile along HW.
        rows = sub if nc >= sub else nc
        tile_hw = max(128, (target_bytes // max(1, rows * itemsize)) // 128 * 128)
        if tile_hw >= hw:
            tile_hw = hw
        return rows, tile_hw

    # Full-width rows; choose how many rows per block.
    tile_hw = hw
    rows = target_bytes // max(1, row_bytes)
    if rows >= nc or nc <= sub:
        rows = nc  # full extent is always a legal block shape
    else:
        rows = max(sub, (rows // sub) * sub)
    return rows, tile_hw


def _ensure_two_steps(rows, tile_hw, nc, hw, itemsize, sub):
    """On dual-TC chips, avoid a 1-step grid for non-trivial tensors."""
    total = nc * hw * itemsize
    if total <= (1 << 20):
        return rows, tile_hw
    if rows < nc or tile_hw < hw:
        return rows, tile_hw  # already >= 2 steps
    if hw >= 256:
        half = -(-((hw + 1) // 2) // 128) * 128
        if 0 < half < hw:
            return rows, half
    if nc >= 2 * sub:
        half = -(-((nc + 1) // 2) // sub) * sub
        if 0 < half < nc:
            return half, tile_hw
    return rows, tile_hw


def normalize(x, mean, std):
    """Per-channel normalize: out[:, c] = (x[:, c] - mean[c]) / std[c].

    x:    [N, C, H, W] (any float dtype; math in f32, output in x.dtype)
    mean: [C]
    std:  [C]
    """
    N, C, H, W = x.shape
    NC, HW = N * C, H * W
    itemsize = x.dtype.itemsize

    mean = jnp.asarray(mean, dtype=jnp.float32).reshape(C)
    std = jnp.asarray(std, dtype=jnp.float32).reshape(C)
    inv_std = 1.0 / std

    # Per-row (n, c) params: scale = 1/std[c], bias = -mean[c]/std[c].
    scale_rows = jnp.tile(inv_std, (N,))                 # (NC,)
    bias_rows = jnp.tile(-mean * inv_std, (N,))          # (NC,)
    params = jnp.stack([scale_rows, bias_rows], axis=1)  # (NC, 2) f32

    # Lane-dense layout: one row per (n, c) slab.
    x2 = x.reshape(NC, HW)

    vmem_cap = _tpu_vmem_capacity_bytes()
    v7x_like = vmem_cap <= 64 * 1024 * 1024
    target_bytes = (2 << 20) if v7x_like else (4 << 20)

    sub = _MIN_SUBLANES.get(itemsize, 8)
    rows, tile_hw = _choose_tiles(NC, HW, itemsize, target_bytes)
    if v7x_like:
        rows, tile_hw = _ensure_two_steps(rows, tile_hw, NC, HW, itemsize, sub)

    grid = (pl.cdiv(NC, rows), pl.cdiv(HW, tile_hw))

    # Double-buffered in + out (+ params) footprint ~ 4-5x block; leave headroom
    # and never request the chip's full physical VMEM.
    block_bytes = rows * tile_hw * itemsize
    hard_cap = min(int(0.75 * vmem_cap), 96 << 20)
    vmem_limit = int(max(16 << 20, min(6 * block_bytes + (1 << 20), hard_cap)))

    out2 = pl.pallas_call(
        _normalize_kernel,
        out_shape=jax.ShapeDtypeStruct((NC, HW), x.dtype),
        grid=grid,
        in_specs=[
            pl.BlockSpec((rows, tile_hw), lambda i, j: (i, j)),
            pl.BlockSpec((rows, 2), lambda i, j: (i, 0)),  # invariant over HW axis
        ],
        out_specs=pl.BlockSpec((rows, tile_hw), lambda i, j: (i, j)),
        compiler_params=pltpu.CompilerParams(
            dimension_semantics=("parallel", "parallel"),
            vmem_limit_bytes=vmem_limit,
        ),
    )(x2, params)

    return out2.reshape(N, C, H, W)


if __name__ == "__main__":
    key = jax.random.PRNGKey(0)
    N, C, H, W = 2, 4, 16, 16
    x = jax.random.normal(key, (N, C, H, W), dtype=jnp.float32)

    # Deterministic per-channel parameters (as the module would be constructed with).
    mean = jnp.array([0.485, 0.456, 0.406, 0.5], dtype=jnp.float32)
    std = jnp.array([0.229, 0.224, 0.225, 0.25], dtype=jnp.float32)

    out = normalize(x, mean, std)
    out = jax.block_until_ready(out)

    # Reference check against plain JAX broadcasting.
    ref = (x - mean[None, :, None, None]) / std[None, :, None, None]
    assert out.shape == x.shape and out.dtype == x.dtype
    # x*(1/s) + (-m/s) vs (x - m)/s differs by a rounding step or two.
    assert jnp.allclose(out, ref, atol=1e-5, rtol=1e-5)

    print("KERNEL_OK")
</pallas_src>

<mosaic_0001>
module attributes {stable_mosaic.version = 11 : i64} {
  func.func @_normalize_kernel(%arg0: i32, %arg1: i32, %arg2: memref<8x256xf32, #tpu.memory_space<vmem>>, %arg3: memref<8x2xf32, #tpu.memory_space<vmem>>, %arg4: memref<8x256xf32, #tpu.memory_space<vmem>>) attributes {dimension_semantics = [#tpu.dimension_semantics<parallel>, #tpu.dimension_semantics<parallel>], iteration_bounds = array<i64: 1, 1>, scalar_prefetch = 0 : i64, scratch_operands = 0 : i64, tpu.core_type = #tpu.core_type<tc>, window_params = [{transform_indices = @transform_0, window_bounds = array<i64: 8, 256>}, {transform_indices = @transform_1, window_bounds = array<i64: 8, 2>}, {transform_indices = @transform_2, window_bounds = array<i64: 8, 256>}]} {
    %c0 = arith.constant 0 : index
    %c0_0 = arith.constant 0 : index
    %0 = vector.load %arg3[%c0, %c0_0] : memref<8x2xf32, #tpu.memory_space<vmem>>, vector<8x2xf32>
    %1 = vector.extract_strided_slice %0 {offsets = [0, 0], sizes = [8, 1], strides = [1, 1]} : vector<8x2xf32> to vector<8x1xf32>
    %2 = vector.extract_strided_slice %0 {offsets = [0, 1], sizes = [8, 1], strides = [1, 1]} : vector<8x2xf32> to vector<8x1xf32>
    %c0_1 = arith.constant 0 : index
    %c0_2 = arith.constant 0 : index
    %3 = vector.load %arg2[%c0_1, %c0_2] : memref<8x256xf32, #tpu.memory_space<vmem>>, vector<8x256xf32>
    %4 = vector.broadcast %1 : vector<8x1xf32> to vector<8x256xf32>
    %5 = arith.mulf %3, %4 : vector<8x256xf32>
    %6 = vector.broadcast %2 : vector<8x1xf32> to vector<8x256xf32>
    %7 = arith.addf %5, %6 : vector<8x256xf32>
    %c0_3 = arith.constant 0 : index
    %c0_4 = arith.constant 0 : index
    %8 = vector.load %arg4[%c0_3, %c0_4] : memref<8x256xf32, #tpu.memory_space<vmem>>, vector<8x256xf32>
    tpu.vector_store %arg4[%c0_3, %c0_4], %7 {strides = array<i32>} : memref<8x256xf32, #tpu.memory_space<vmem>>, vector<8x256xf32>,
    return
  }
  func.func @transform_0(%arg0: i32, %arg1: i32) -> (i32, i32) {
    %c0_i32 = arith.constant 0 : i32
    return %arg0, %arg1 : i32, i32
  }
  func.func @transform_1(%arg0: i32, %arg1: i32) -> (i32, i32) {
    %c0_i32 = arith.constant 0 : i32
    %c0_i32_0 = arith.constant 0 : i32
    return %arg0, %c0_i32 : i32, i32
  }
  func.func @transform_2(%arg0: i32, %arg1: i32) -> (i32, i32) {
    %c0_i32 = arith.constant 0 : i32
    return %arg0, %arg1 : i32, i32
  }
}

</mosaic_0001>

<llo_original>
// kernel: tpu_custom_call.1
$region0: #{tpu_custom_call.1}
  #allocation0 [shape = 'u32[]', space=smem, size = 0x4, offset = 0x4, fixed_abs, tag = 'smem constant byte address 0x4 - core index']
  #allocation1 [shape = 'u32[144,128]{1,0:T(1,128)}', space=vmem, size = 0x12000, scoped, tag = 'internal scratch']
  %s0 = inlined_call_operand.hbm [shape: f32[8,256], index: 0, kind: input, shape index: {}]
  %s1 = inlined_call_operand.vmem [shape: f32[8,2], index: 1, kind: input, shape index: {}]
  %s2 = inlined_call_operand.hbm [shape: f32[8,256], index: 2, kind: output, shape index: {}]
  %s3 = sld [smem:[#allocation0]]
  $region22: #{tpu_custom_call.1} parent=0
    _
  %s5 = ssub.s32 1, %s3
  %s6 = scalar_select 0, %s5, %s3
  $region1: #{tpu_custom_call.1} parent=0
    #allocation2 [shape = 'u8[8192]{0}', space=vmem, size = 0x2000, scoped, tag = 'input window, operand 0, single buffered']
    #allocation3 [shape = 's32[1]{0}', space=sflag, size = 0x4, scoped, tag = 'scoped memory for tpu_custom_call.1']
    #allocation4 [shape = 's32[1]{0}', space=sflag, size = 0x4, scoped, tag = 'scoped memory for tpu_custom_call.1']
    #allocation5 [shape = 'u8[8192]{0}', space=vmem, size = 0x2000, scoped, tag = 'output window, operand 0, single buffered']
    %7 = vsyncpa [#allocation3], 0
    %8 = vsyncpa [#allocation4], 0
    // Predicated region
    $region2: #{tpu_custom_call.1} parent=1 // pred_check
      _
    $region3: #{tpu_custom_call.1} parent=1 // pred_check_branch
      %10 = sbr.rel (0) target = $region5
    $region4: #{tpu_custom_call.1} parent=1 // pred_region
      %s12 = ssub.s32 256, 256
      %13 = vsyncadd [#allocation3], %s12
      %s15 = sshll.u32 [#allocation2], 4
      %s16 = int_to_ptr.vmem [resolvable:$true] %s15
      %18 = dma.hbm_to_vmem [thread:$0]  %s0, 256, %s16, [#allocation3]
    $region5: #{tpu_custom_call.1} parent=1 // pred_fallthru
      _
    // Predicated region
    $region6: #{tpu_custom_call.1} parent=1 // pred_check
      _
    $region7: #{tpu_custom_call.1} parent=1 // pred_check_branch
      %20 = sbr.rel (0) target = $region9
    $region8: #{tpu_custom_call.1} parent=1 // pred_region
      _
    $region9: #{tpu_custom_call.1} parent=1 // pred_fallthru
      _
    // Predicated region
    $region10: #{tpu_custom_call.1} parent=1 // pred_check
      _
    $region11: #{tpu_custom_call.1} parent=1 // pred_check_branch
      %22 = sbr.rel (0) target = $region13
    $region12: #{tpu_custom_call.1} parent=1 // pred_region
      %23 = dma.done [#allocation3], 256
    $region13: #{tpu_custom_call.1} parent=1 // pred_fallthru
      _
    %v24 = vld [vmem:[%s1] sm:$0xff]
    %v25 = vld [vmem:[#allocation2] sm:$0xff]
    %v26 = vld [vmem:[#allocation2 + $0x8] sm:$0xff]
    %28 = vset.pattern.permute.xlu0 0
    %29 = vperm.xlu0 %28, %v24
    %v30 = vpop.permute.xlu0 %29
    %v32 = vmul.f32 %v25, %v30
    %v33 = vmul.f32 %v26, %v30
    %34 = vset.pattern.permute.xlu0 1
    %35 = vperm.xlu0 %34, %v24
    %v36 = vpop.permute.xlu0 %35
    %v38 = vadd.f32 %v32, %v36
    %v39 = vadd.f32 %v33, %v36
    %40 = vst [vmem:[#allocation5] sm:$0xff] %v38
    %41 = vst [vmem:[#allocation5 + $0x8] sm:$0xff] %v39
    // Predicated region
    $region14: #{tpu_custom_call.1} parent=1 // pred_check
      _
    $region15: #{tpu_custom_call.1} parent=1 // pred_check_branch
      %43 = sbr.rel (0) target = $region17
    $region16: #{tpu_custom_call.1} parent=1 // pred_region
      %s45 = ssub.s32 256, 256
      %46 = vsyncadd [#allocation4], %s45
      %s48 = sshll.u32 [#allocation5], 4
      %s49 = int_to_ptr.vmem [resolvable:$true] %s48
      %51 = dma.vmem_to_hbm [thread:$0]  %s49, 256, %s2, [#allocation4]
    $region17: #{tpu_custom_call.1} parent=1 // pred_fallthru
      _
    // Predicated region
    $region18: #{tpu_custom_call.1} parent=1 // pred_check
      _
    $region19: #{tpu_custom_call.1} parent=1 // pred_check_branch
      %53 = sbr.rel (0) target = $region21
    $region20: #{tpu_custom_call.1} parent=1 // pred_region
      %54 = dma.done [#allocation4], 256
    $region21: #{tpu_custom_call.1} parent=1 // pred_fallthru
      _
    %55 = vsyncpa [#allocation3], 1
    %56 = vsyncpa [#allocation4], 1

</llo_original>
